<compile_context>
chip_gen: v6e
topology: v6e:2x2x1
jax: 0.10.0
libtpu: 0.0.40
codegen_flags: <defaults>
</compile_context>

<pallas_src>
import functools
import math

import jax
import jax.numpy as jnp
from jax import lax
from jax.experimental import pallas as pl
from jax.experimental.pallas import tpu as pltpu


def _round_up(x: int, m: int) -> int:
    return ((x + m - 1) // m) * m


# ----------------------------------------------------------------------------
# Pallas kernel
# ----------------------------------------------------------------------------
def _rainbow_kernel(x_ref, w1_ref, b1_ref, w2_ref, b2_ref, wh_ref, bh_ref, out_ref,
                    *, action_dim: int, atom_size: int, atom_pad: int):
    x = x_ref[...]                                                       # (TB, S)

    # Feature trunk: two (Noisy)Linear + ReLU layers (f32 accumulation).
    h = jnp.dot(x, w1_ref[...], preferred_element_type=jnp.float32) + b1_ref[...]
    h = jnp.maximum(h, 0.0).astype(w2_ref.dtype)
    h = jnp.dot(h, w2_ref[...], preferred_element_type=jnp.float32) + b2_ref[...]
    h = jnp.maximum(h, 0.0).astype(wh_ref.dtype)                         # (TB, H2p)

    # Fused dueling heads: one matmul -> (TB, (A+1)*atom_pad); every per-action group
    # starts on a 128-lane (vreg) boundary, so all slices below are full-vreg ops.
    heads = jnp.dot(h, wh_ref[...], preferred_element_type=jnp.float32) + bh_ref[...]

    adv = [heads[:, a * atom_pad:(a + 1) * atom_pad] for a in range(action_dim)]
    val = heads[:, action_dim * atom_pad:(action_dim + 1) * atom_pad]    # (TB, P)

    adv_sum = adv[0]
    for a in range(1, action_dim):
        adv_sum = adv_sum + adv[a]
    corr = val - adv_sum * (1.0 / float(action_dim))                     # val - adv_mean

    tb = heads.shape[0]
    lane = lax.broadcasted_iota(jnp.int32, (tb, atom_pad), 1)
    valid = lane < atom_size                                             # mask padded atoms

    probs = []
    for a in range(action_dim):
        q = jnp.where(valid, adv[a] + corr, -1e30)                       # (TB, P)
        m = jnp.max(q, axis=-1, keepdims=True)
        e = jnp.exp(q - m)                                               # padded lanes -> 0
        s = jnp.sum(e, axis=-1, keepdims=True)
        probs.append(e / s)        # exact divide: rows sum to 1 (log-prob / C51-safe)

    # Single lane-dense store: (TB, action_dim * atom_pad), bf16 by default.
    out_ref[...] = jnp.concatenate(probs, axis=1).astype(out_ref.dtype)


# ----------------------------------------------------------------------------
# Head weight packing: concat advantage + value, pad atoms to 128 lanes per group
# ----------------------------------------------------------------------------
def _pack_head(wa, ba, wv, bv, *, action_dim, atom_size, atom_pad):
    H = wa.shape[0]
    pad = atom_pad - atom_size
    wa3 = jnp.pad(wa.reshape(H, action_dim, atom_size), ((0, 0), (0, 0), (0, pad)))
    wv3 = jnp.pad(wv.reshape(H, 1, atom_size), ((0, 0), (0, 0), (0, pad)))
    w_head = jnp.concatenate([wa3, wv3], axis=1).reshape(H, (action_dim + 1) * atom_pad)
    ba3 = jnp.pad(ba.reshape(1, action_dim, atom_size), ((0, 0), (0, 0), (0, pad)))
    bv3 = jnp.pad(bv.reshape(1, 1, atom_size), ((0, 0), (0, 0), (0, pad)))
    b_head = jnp.concatenate([ba3, bv3], axis=1).reshape(1, (action_dim + 1) * atom_pad)
    return w_head, b_head


# ----------------------------------------------------------------------------
# Wrapper
# ----------------------------------------------------------------------------
def rainbow_forward(x, params, *, action_dim: int, atom_size: int,
                    compute_dtype=jnp.bfloat16, out_dtype=jnp.bfloat16,
                    block_b: int = 1024):
    """Rainbow DQN forward pass in a single Pallas TPU kernel."""
    B, S = x.shape
    atom_pad = _round_up(atom_size, 128)

    # Batch tiling: 16-row multiples for bf16 (sublane packing), 8 for f32.
    row_mult = 16 if jnp.dtype(compute_dtype) == jnp.dtype(jnp.bfloat16) else 8
    B_r = _round_up(B, row_mult)
    TB = min(block_b, B_r)
    # v7x: keep >=2 grid steps whenever the batch allows (largest TB with >=2 steps),
    # so the "parallel" axis can shard across both TensorCores.
    if B_r > row_mult:
        TB = min(TB, _round_up((B_r + 1) // 2, row_mult))
    Bp = _round_up(B, TB)

    xk = x.astype(compute_dtype)
    if Bp != B:
        xk = jnp.pad(xk, ((0, Bp - B), (0, 0)))

    # Hidden dims zero-padded to multiples of 128 -> full-vreg trunk activations.
    H1 = params["w1"].shape[1]
    H2 = params["w2"].shape[1]
    H1p = _round_up(H1, 128)
    H2p = _round_up(H2, 128)

    w1 = jnp.pad(params["w1"], ((0, 0), (0, H1p - H1))).astype(compute_dtype)
    b1 = jnp.pad(params["b1"], ((0, 0), (0, H1p - H1))).astype(jnp.float32)
    w2 = jnp.pad(params["w2"], ((0, H1p - H1), (0, H2p - H2))).astype(compute_dtype)
    b2 = jnp.pad(params["b2"], ((0, 0), (0, H2p - H2))).astype(jnp.float32)
    wh, bh = _pack_head(params["wa"], params["ba"], params["wv"], params["bv"],
                        action_dim=action_dim, atom_size=atom_size, atom_pad=atom_pad)
    wh = jnp.pad(wh, ((0, H2p - H2), (0, 0))).astype(compute_dtype)
    bh = bh.astype(jnp.float32)

    head_out = (action_dim + 1) * atom_pad
    out_cols = action_dim * atom_pad

    kernel = functools.partial(_rainbow_kernel, action_dim=action_dim,
                               atom_size=atom_size, atom_pad=atom_pad)

    cd_bytes = jnp.dtype(compute_dtype).itemsize
    ob_bytes = jnp.dtype(out_dtype).itemsize
    flops = 2 * Bp * (S * H1p + H1p * H2p + H2p * head_out)
    transcendentals = Bp * out_cols
    bytes_accessed = int(
        Bp * S * cd_bytes
        + (w1.size + w2.size + wh.size) * cd_bytes
        + (b1.size + b2.size + bh.size) * 4
        + Bp * out_cols * ob_bytes)

    # VMEM working set (double-buffered x/out + resident weights).  Only raise the
    # scoped limit when a very large TB would exceed the default (v7x: 32 MiB scoped).
    vmem_needed = int(
        2 * TB * S * cd_bytes
        + 2 * TB * out_cols * ob_bytes
        + 2 * (w1.size + w2.size + wh.size) * cd_bytes
        + 2 * (b1.size + b2.size + bh.size) * 4)
    compiler_kwargs = {}
    if vmem_needed > 24 * 1024 * 1024:
        compiler_kwargs["vmem_limit_bytes"] = min(int(vmem_needed * 3 // 2),
                                                  100 * 1024 * 1024)

    out_pad = pl.pallas_call(
        kernel,
        out_shape=jax.ShapeDtypeStruct((Bp, out_cols), out_dtype),
        grid=(Bp // TB,),
        in_specs=[
            pl.BlockSpec((TB, S), lambda i: (i, 0)),           # x: tiled over batch
            # Weights/biases: constant index_map -> VMEM-resident, never re-DMA'd.
            pl.BlockSpec((S, H1p), lambda i: (0, 0)),
            pl.BlockSpec((1, H1p), lambda i: (0, 0)),
            pl.BlockSpec((H1p, H2p), lambda i: (0, 0)),
            pl.BlockSpec((1, H2p), lambda i: (0, 0)),
            pl.BlockSpec((H2p, head_out), lambda i: (0, 0)),
            pl.BlockSpec((1, head_out), lambda i: (0, 0)),
        ],
        out_specs=pl.BlockSpec((TB, out_cols), lambda i: (i, 0)),
        compiler_params=pltpu.CompilerParams(
            dimension_semantics=("parallel",), **compiler_kwargs),
        cost_estimate=pl.CostEstimate(flops=flops,
                                      transcendentals=transcendentals,
                                      bytes_accessed=bytes_accessed),
    )(xk, w1, b1, w2, b2, wh, bh)

    # Lane-dense kernel output -> (B, A, atom_size) outside the kernel.
    out = out_pad[:B].reshape(B, action_dim, atom_pad)[:, :, :atom_size]
    return out


# ----------------------------------------------------------------------------
# Deterministic parameter construction (NoisyLinear, training-mode semantics)
# ----------------------------------------------------------------------------
def _scale_noise(key, size):
    z = jax.random.normal(key, (size,), dtype=jnp.float32)
    return jnp.sign(z) * jnp.sqrt(jnp.abs(z))


def _noisy_linear_effective(key, in_features, out_features, std_init=0.5):
    """Returns (W_eff, b_eff) with W_eff stored as (in, out)."""
    k_mu_w, k_mu_b, k_eps_in, k_eps_out = jax.random.split(key, 4)
    mu_range = 1.0 / math.sqrt(in_features)

    weight_mu = jax.random.uniform(k_mu_w, (out_features, in_features),
                                   minval=-mu_range, maxval=mu_range,
                                   dtype=jnp.float32)
    weight_sigma = jnp.full((out_features, in_features),
                            std_init / math.sqrt(in_features), dtype=jnp.float32)
    bias_mu = jax.random.uniform(k_mu_b, (out_features,),
                                 minval=-mu_range, maxval=mu_range,
                                 dtype=jnp.float32)
    bias_sigma = jnp.full((out_features,),
                          std_init / math.sqrt(out_features), dtype=jnp.float32)

    eps_in = _scale_noise(k_eps_in, in_features)
    eps_out = _scale_noise(k_eps_out, out_features)
    weight_epsilon = jnp.outer(eps_out, eps_in)
    bias_epsilon = eps_out

    w_eff = weight_mu + weight_sigma * weight_epsilon                 # (out, in)
    b_eff = bias_mu + bias_sigma * bias_epsilon                       # (out,)
    return w_eff.T, b_eff.reshape(1, out_features)                    # (in, out), (1, out)


def build_params(key, state_dim, hidden_dims, action_dim, atom_size):
    k1, k2, ka, kv = jax.random.split(key, 4)
    w1, b1 = _noisy_linear_effective(k1, state_dim, hidden_dims[0])
    w2, b2 = _noisy_linear_effective(k2, hidden_dims[0], hidden_dims[1])
    wa, ba = _noisy_linear_effective(ka, hidden_dims[1], action_dim * atom_size)
    wv, bv = _noisy_linear_effective(kv, hidden_dims[1], atom_size)
    return {"w1": w1, "b1": b1, "w2": w2, "b2": b2,
            "wa": wa, "ba": ba, "wv": wv, "bv": bv}


# ----------------------------------------------------------------------------
# Pure-JAX reference (mirrors the PyTorch forward) for correctness checks
# ----------------------------------------------------------------------------
def rainbow_reference(x, params, *, action_dim, atom_size, compute_dtype=jnp.float32):
    cd = compute_dtype
    w1 = params["w1"].astype(cd)
    w2 = params["w2"].astype(cd)
    wa = params["wa"].astype(cd)
    wv = params["wv"].astype(cd)
    b1, b2, ba, bv = params["b1"], params["b2"], params["ba"], params["bv"]

    h = jnp.maximum(jnp.dot(x.astype(cd), w1, preferred_element_type=jnp.float32) + b1, 0.0)
    h = jnp.maximum(jnp.dot(h.astype(cd), w2, preferred_element_type=jnp.float32) + b2, 0.0)
    hc = h.astype(cd)
    adv = (jnp.dot(hc, wa, preferred_element_type=jnp.float32) + ba
           ).reshape(-1, action_dim, atom_size)
    val = (jnp.dot(hc, wv, preferred_element_type=jnp.float32) + bv
           ).reshape(-1, 1, atom_size)
    q_atoms = val + adv - adv.mean(axis=1, keepdims=True)
    return jax.nn.softmax(q_atoms, axis=2)


# ----------------------------------------------------------------------------
if __name__ == "__main__":
    BATCH = 2
    STATE_DIM = 32
    HIDDEN_DIMS = [64, 64]
    ACTION_DIM = 4
    ATOM_SIZE = 51

    key = jax.random.PRNGKey(0)
    k_params, k_state, k_state2 = jax.random.split(key, 3)

    params = build_params(k_params, STATE_DIM, HIDDEN_DIMS, ACTION_DIM, ATOM_SIZE)
    state = jax.random.normal(k_state, (BATCH, STATE_DIM), dtype=jnp.float32)

    # --- default path: bf16 compute + bf16 output (MXU-native, half writeback) ----
    q_bf16 = rainbow_forward(state, params, action_dim=ACTION_DIM, atom_size=ATOM_SIZE)
    q_bf16 = jax.block_until_ready(q_bf16).astype(jnp.float32)
    ref_bf16 = rainbow_reference(state, params, action_dim=ACTION_DIM,
                                 atom_size=ATOM_SIZE, compute_dtype=jnp.bfloat16)
    assert q_bf16.shape == (BATCH, ACTION_DIM, ATOM_SIZE)
    assert jnp.allclose(q_bf16, ref_bf16, atol=5e-3, rtol=5e-3)
    assert jnp.allclose(jnp.sum(q_bf16, axis=-1), 1.0, atol=5e-3)

    # --- f32 compute + f32 output path (tight correctness check) ------------------
    q_f32 = rainbow_forward(state, params, action_dim=ACTION_DIM, atom_size=ATOM_SIZE,
                            compute_dtype=jnp.float32, out_dtype=jnp.float32)
    q_f32 = jax.block_until_ready(q_f32)
    ref_f32 = rainbow_reference(state, params, action_dim=ACTION_DIM,
                                atom_size=ATOM_SIZE, compute_dtype=jnp.float32)
    assert q_f32.shape == (BATCH, ACTION_DIM, ATOM_SIZE)
    assert jnp.allclose(q_f32, ref_f32, atol=1e-4, rtol=1e-4)
    assert jnp.allclose(jnp.sum(q_f32, axis=-1), 1.0, atol=1e-4)

    # --- non-multiple batch: exercises batch padding + a >=2-step "parallel" grid --
    state2 = jax.random.normal(k_state2, (100, STATE_DIM), dtype=jnp.float32)
    q2 = rainbow_forward(state2, params, action_dim=ACTION_DIM, atom_size=ATOM_SIZE)
    q2 = jax.block_until_ready(q2).astype(jnp.float32)
    ref2 = rainbow_reference(state2, params, action_dim=ACTION_DIM,
                             atom_size=ATOM_SIZE, compute_dtype=jnp.bfloat16)
    assert q2.shape == (100, ACTION_DIM, ATOM_SIZE)
    assert jnp.allclose(q2, ref2, atol=5e-3, rtol=5e-3)

    print("KERNEL_OK")
</pallas_src>

<mosaic_0001>
module attributes {stable_mosaic.version = 11 : i64} {
  func.func @_rainbow_kernel(%arg0: i32, %arg1: memref<16x32xbf16, #tpu.memory_space<vmem>>, %arg2: memref<32x128xbf16, #tpu.memory_space<vmem>>, %arg3: memref<1x128xf32, #tpu.memory_space<vmem>>, %arg4: memref<128x128xbf16, #tpu.memory_space<vmem>>, %arg5: memref<1x128xf32, #tpu.memory_space<vmem>>, %arg6: memref<128x640xbf16, #tpu.memory_space<vmem>>, %arg7: memref<1x640xf32, #tpu.memory_space<vmem>>, %arg8: memref<16x512xbf16, #tpu.memory_space<vmem>>) attributes {dimension_semantics = [#tpu.dimension_semantics<parallel>], iteration_bounds = array<i64: 1>, scalar_prefetch = 0 : i64, scratch_operands = 0 : i64, tpu.core_type = #tpu.core_type<tc>, window_params = [{transform_indices = @transform_0, window_bounds = array<i64: 16, 32>}, {pipeline_mode = #tpu.pipeline_mode<synchronous>, transform_indices = @transform_1, window_bounds = array<i64: 32, 128>}, {pipeline_mode = #tpu.pipeline_mode<synchronous>, transform_indices = @transform_2, window_bounds = array<i64: 1, 128>}, {pipeline_mode = #tpu.pipeline_mode<synchronous>, transform_indices = @transform_3, window_bounds = array<i64: 128, 128>}, {pipeline_mode = #tpu.pipeline_mode<synchronous>, transform_indices = @transform_4, window_bounds = array<i64: 1, 128>}, {pipeline_mode = #tpu.pipeline_mode<synchronous>, transform_indices = @transform_5, window_bounds = array<i64: 128, 640>}, {pipeline_mode = #tpu.pipeline_mode<synchronous>, transform_indices = @transform_6, window_bounds = array<i64: 1, 640>}, {transform_indices = @transform_7, window_bounds = array<i64: 16, 512>}]} {
    %c0 = arith.constant 0 : index
    %c0_0 = arith.constant 0 : index
    %0 = vector.load %arg1[%c0, %c0_0] : memref<16x32xbf16, #tpu.memory_space<vmem>>, vector<16x32xbf16>
    %c0_1 = arith.constant 0 : index
    %c0_2 = arith.constant 0 : index
    %1 = vector.load %arg2[%c0_1, %c0_2] : memref<32x128xbf16, #tpu.memory_space<vmem>>, vector<32x128xbf16>
    %cst = arith.constant dense<0.000000e+00> : vector<16x128xf32>
    %2 = tpu.matmul %0, %1, %cst {dimension_numbers = #tpu.dot_dimension_numbers<[1], [0], [0], [1], [0, 0, 1, 1], [], []>} : vector<16x32xbf16>, vector<32x128xbf16>, vector<16x128xf32> -> vector<16x128xf32>
    %c0_3 = arith.constant 0 : index
    %c0_4 = arith.constant 0 : index
    %3 = vector.load %arg3[%c0_3, %c0_4] : memref<1x128xf32, #tpu.memory_space<vmem>>, vector<1x128xf32>
    %4 = vector.broadcast %3 : vector<1x128xf32> to vector<16x128xf32>
    %5 = arith.addf %2, %4 : vector<16x128xf32>
    %cst_5 = arith.constant 0.000000e+00 : f32
    %6 = vector.broadcast %cst_5 : f32 to vector<16x128xf32>
    %7 = arith.maximumf %5, %6 : vector<16x128xf32>
    %8 = arith.truncf %7 : vector<16x128xf32> to vector<16x128xbf16>
    %c0_6 = arith.constant 0 : index
    %c0_7 = arith.constant 0 : index
    %9 = vector.load %arg4[%c0_6, %c0_7] : memref<128x128xbf16, #tpu.memory_space<vmem>>, vector<128x128xbf16>
    %cst_8 = arith.constant dense<0.000000e+00> : vector<16x128xf32>
    %10 = tpu.matmul %8, %9, %cst_8 {dimension_numbers = #tpu.dot_dimension_numbers<[1], [0], [0], [1], [0, 0, 1, 1], [], []>} : vector<16x128xbf16>, vector<128x128xbf16>, vector<16x128xf32> -> vector<16x128xf32>
    %c0_9 = arith.constant 0 : index
    %c0_10 = arith.constant 0 : index
    %11 = vector.load %arg5[%c0_9, %c0_10] : memref<1x128xf32, #tpu.memory_space<vmem>>, vector<1x128xf32>
    %12 = vector.broadcast %11 : vector<1x128xf32> to vector<16x128xf32>
    %13 = arith.addf %10, %12 : vector<16x128xf32>
    %cst_11 = arith.constant 0.000000e+00 : f32
    %14 = vector.broadcast %cst_11 : f32 to vector<16x128xf32>
    %15 = arith.maximumf %13, %14 : vector<16x128xf32>
    %16 = arith.truncf %15 : vector<16x128xf32> to vector<16x128xbf16>
    %c0_12 = arith.constant 0 : index
    %c0_13 = arith.constant 0 : index
    %17 = vector.load %arg6[%c0_12, %c0_13] : memref<128x640xbf16, #tpu.memory_space<vmem>>, vector<128x640xbf16>
    %cst_14 = arith.constant dense<0.000000e+00> : vector<16x640xf32>
    %18 = tpu.matmul %16, %17, %cst_14 {dimension_numbers = #tpu.dot_dimension_numbers<[1], [0], [0], [1], [0, 0, 1, 1], [], []>} : vector<16x128xbf16>, vector<128x640xbf16>, vector<16x640xf32> -> vector<16x640xf32>
    %c0_15 = arith.constant 0 : index
    %c0_16 = arith.constant 0 : index
    %19 = vector.load %arg7[%c0_15, %c0_16] : memref<1x640xf32, #tpu.memory_space<vmem>>, vector<1x640xf32>
    %20 = vector.broadcast %19 : vector<1x640xf32> to vector<16x640xf32>
    %21 = arith.addf %18, %20 : vector<16x640xf32>
    %22 = vector.extract_strided_slice %21 {offsets = [0, 0], sizes = [16, 128], strides = [1, 1]} : vector<16x640xf32> to vector<16x128xf32>
    %23 = vector.extract_strided_slice %21 {offsets = [0, 128], sizes = [16, 128], strides = [1, 1]} : vector<16x640xf32> to vector<16x128xf32>
    %24 = vector.extract_strided_slice %21 {offsets = [0, 256], sizes = [16, 128], strides = [1, 1]} : vector<16x640xf32> to vector<16x128xf32>
    %25 = vector.extract_strided_slice %21 {offsets = [0, 384], sizes = [16, 128], strides = [1, 1]} : vector<16x640xf32> to vector<16x128xf32>
    %26 = vector.extract_strided_slice %21 {offsets = [0, 512], sizes = [16, 128], strides = [1, 1]} : vector<16x640xf32> to vector<16x128xf32>
    %27 = arith.addf %22, %23 : vector<16x128xf32>
    %28 = arith.addf %27, %24 : vector<16x128xf32>
    %29 = arith.addf %28, %25 : vector<16x128xf32>
    %cst_17 = arith.constant 2.500000e-01 : f32
    %30 = vector.broadcast %cst_17 : f32 to vector<16x128xf32>
    %31 = arith.mulf %29, %30 : vector<16x128xf32>
    %32 = arith.subf %26, %31 : vector<16x128xf32>
    %33 = tpu.iota {dimensions = array<i32: 1>} : vector<16x128xi32>
    %c51_i32 = arith.constant 51 : i32
    %34 = vector.broadcast %c51_i32 : i32 to vector<16x128xi32>
    %35 = arith.cmpi slt, %33, %34 : vector<16x128xi32>
    %36 = arith.addf %22, %32 : vector<16x128xf32>
    %cst_18 = arith.constant -1.000000e+30 : f32
    %37 = vector.broadcast %cst_18 : f32 to vector<16x128xf32>
    %38 = arith.select %35, %36, %37 : vector<16x128xi1>, vector<16x128xf32>
    %cst_19 = arith.constant dense<0xFF800000> : vector<16xf32>
    %39 = vector.multi_reduction <maximumf>, %38, %cst_19 [1] : vector<16x128xf32> to vector<16xf32>
    %40 = vector.shape_cast %39 : vector<16xf32> to vector<16x1xf32>
    %41 = vector.broadcast %40 : vector<16x1xf32> to vector<16x128xf32>
    %42 = arith.subf %38, %41 : vector<16x128xf32>
    %43 = math.exp %42 : vector<16x128xf32>
    %cst_20 = arith.constant dense<0.000000e+00> : vector<16xf32>
    %44 = vector.multi_reduction <add>, %43, %cst_20 [1] : vector<16x128xf32> to vector<16xf32>
    %45 = vector.shape_cast %44 : vector<16xf32> to vector<16x1xf32>
    %46 = vector.broadcast %45 : vector<16x1xf32> to vector<16x128xf32>
    %47 = arith.divf %43, %46 : vector<16x128xf32>
    %48 = arith.addf %23, %32 : vector<16x128xf32>
    %cst_21 = arith.constant -1.000000e+30 : f32
    %49 = vector.broadcast %cst_21 : f32 to vector<16x128xf32>
    %50 = arith.select %35, %48, %49 : vector<16x128xi1>, vector<16x128xf32>
    %cst_22 = arith.constant dense<0xFF800000> : vector<16xf32>
    %51 = vector.multi_reduction <maximumf>, %50, %cst_22 [1] : vector<16x128xf32> to vector<16xf32>
    %52 = vector.shape_cast %51 : vector<16xf32> to vector<16x1xf32>
    %53 = vector.broadcast %52 : vector<16x1xf32> to vector<16x128xf32>
    %54 = arith.subf %50, %53 : vector<16x128xf32>
    %55 = math.exp %54 : vector<16x128xf32>
    %cst_23 = arith.constant dense<0.000000e+00> : vector<16xf32>
    %56 = vector.multi_reduction <add>, %55, %cst_23 [1] : vector<16x128xf32> to vector<16xf32>
    %57 = vector.shape_cast %56 : vector<16xf32> to vector<16x1xf32>
    %58 = vector.broadcast %57 : vector<16x1xf32> to vector<16x128xf32>
    %59 = arith.divf %55, %58 : vector<16x128xf32>
    %60 = arith.addf %24, %32 : vector<16x128xf32>
    %cst_24 = arith.constant -1.000000e+30 : f32
    %61 = vector.broadcast %cst_24 : f32 to vector<16x128xf32>
    %62 = arith.select %35, %60, %61 : vector<16x128xi1>, vector<16x128xf32>
    %cst_25 = arith.constant dense<0xFF800000> : vector<16xf32>
    %63 = vector.multi_reduction <maximumf>, %62, %cst_25 [1] : vector<16x128xf32> to vector<16xf32>
    %64 = vector.shape_cast %63 : vector<16xf32> to vector<16x1xf32>
    %65 = vector.broadcast %64 : vector<16x1xf32> to vector<16x128xf32>
    %66 = arith.subf %62, %65 : vector<16x128xf32>
    %67 = math.exp %66 : vector<16x128xf32>
    %cst_26 = arith.constant dense<0.000000e+00> : vector<16xf32>
    %68 = vector.multi_reduction <add>, %67, %cst_26 [1] : vector<16x128xf32> to vector<16xf32>
    %69 = vector.shape_cast %68 : vector<16xf32> to vector<16x1xf32>
    %70 = vector.broadcast %69 : vector<16x1xf32> to vector<16x128xf32>
    %71 = arith.divf %67, %70 : vector<16x128xf32>
    %72 = arith.addf %25, %32 : vector<16x128xf32>
    %cst_27 = arith.constant -1.000000e+30 : f32
    %73 = vector.broadcast %cst_27 : f32 to vector<16x128xf32>
    %74 = arith.select %35, %72, %73 : vector<16x128xi1>, vector<16x128xf32>
    %cst_28 = arith.constant dense<0xFF800000> : vector<16xf32>
    %75 = vector.multi_reduction <maximumf>, %74, %cst_28 [1] : vector<16x128xf32> to vector<16xf32>
    %76 = vector.shape_cast %75 : vector<16xf32> to vector<16x1xf32>
    %77 = vector.broadcast %76 : vector<16x1xf32> to vector<16x128xf32>
    %78 = arith.subf %74, %77 : vector<16x128xf32>
    %79 = math.exp %78 : vector<16x128xf32>
    %cst_29 = arith.constant dense<0.000000e+00> : vector<16xf32>
    %80 = vector.multi_reduction <add>, %79, %cst_29 [1] : vector<16x128xf32> to vector<16xf32>
    %81 = vector.shape_cast %80 : vector<16xf32> to vector<16x1xf32>
    %82 = vector.broadcast %81 : vector<16x1xf32> to vector<16x128xf32>
    %83 = arith.divf %79, %82 : vector<16x128xf32>
    %84 = tpu.concatenate %47, %59, %71, %83 in 1 : vector<16x128xf32>, vector<16x128xf32>, vector<16x128xf32>, vector<16x128xf32> -> vector<16x512xf32>
    %85 = arith.truncf %84 : vector<16x512xf32> to vector<16x512xbf16>
    %c0_30 = arith.constant 0 : index
    %c0_31 = arith.constant 0 : index
    %86 = vector.load %arg8[%c0_30, %c0_31] : memref<16x512xbf16, #tpu.memory_space<vmem>>, vector<16x512xbf16>
    tpu.vector_store %arg8[%c0_30, %c0_31], %85 {strides = array<i32>} : memref<16x512xbf16, #tpu.memory_space<vmem>>, vector<16x512xbf16>,
    return
  }
  func.func @transform_0(%arg0: i32) -> (i32, i32) {
    %c0_i32 = arith.constant 0 : i32
    %c0_i32_0 = arith.constant 0 : i32
    return %arg0, %c0_i32 : i32, i32
  }
  func.func @transform_1(%arg0: i32) -> (i32, i32) {
    %c0_i32 = arith.constant 0 : i32
    %c0_i32_0 = arith.constant 0 : i32
    %c0_i32_1 = arith.constant 0 : i32
    return %c0_i32, %c0_i32_0 : i32, i32
  }
  func.func @transform_2(%arg0: i32) -> (i32, i32) {
    %c0_i32 = arith.constant 0 : i32
    %c0_i32_0 = arith.constant 0 : i32
    %c0_i32_1 = arith.constant 0 : i32
    return %c0_i32, %c0_i32_0 : i32, i32
  }
  func.func @transform_3(%arg0: i32) -> (i32, i32) {
    %c0_i32 = arith.constant 0 : i32
    %c0_i32_0 = arith.constant 0 : i32
    %c0_i32_1 = arith.constant 0 : i32
    return %c0_i32, %c0_i32_0 : i32, i32
  }
  func.func @transform_4(%arg0: i32) -> (i32, i32) {
    %c0_i32 = arith.constant 0 : i32
    %c0_i32_0 = arith.constant 0 : i32
    %c0_i32_1 = arith.constant 0 : i32
    return %c0_i32, %c0_i32_0 : i32, i32
  }
  func.func @transform_5(%arg0: i32) -> (i32, i32) {
    %c0_i32 = arith.constant 0 : i32
    %c0_i32_0 = arith.constant 0 : i32
    %c0_i32_1 = arith.constant 0 : i32
    return %c0_i32, %c0_i32_0 : i32, i32
  }
  func.func @transform_6(%arg0: i32) -> (i32, i32) {
    %c0_i32 = arith.constant 0 : i32
    %c0_i32_0 = arith.constant 0 : i32
    %c0_i32_1 = arith.constant 0 : i32
    return %c0_i32, %c0_i32_0 : i32, i32
  }
  func.func @transform_7(%arg0: i32) -> (i32, i32) {
    %c0_i32 = arith.constant 0 : i32
    %c0_i32_0 = arith.constant 0 : i32
    return %arg0, %c0_i32 : i32, i32
  }
}

</mosaic_0001>

<llo_original>
// kernel: tpu_custom_call.1
$region0: #{tpu_custom_call.1}
  #allocation0 [shape = 'u32[]', space=smem, size = 0x4, offset = 0x4, fixed_abs, tag = 'smem constant byte address 0x4 - core index']
  #allocation1 [shape = 'u32[144,128]{1,0:T(1,128)}', space=vmem, size = 0x12000, scoped, tag = 'internal scratch']
  %s0 = inlined_call_operand.hbm [shape: bf16[16,32], index: 0, kind: input, shape index: {}]
  %s1 = inlined_call_operand.hbm [shape: bf16[32,128], index: 1, kind: input, shape index: {}]
  %s2 = inlined_call_operand.vmem [shape: f32[1,128], index: 2, kind: input, shape index: {}]
  %s3 = inlined_call_operand.hbm [shape: bf16[128,128], index: 3, kind: input, shape index: {}]
  %s4 = inlined_call_operand.vmem [shape: f32[1,128], index: 4, kind: input, shape index: {}]
  %s5 = inlined_call_operand.hbm [shape: bf16[128,640], index: 5, kind: input, shape index: {}]
  %s6 = inlined_call_operand.vmem [shape: f32[1,640], index: 6, kind: input, shape index: {}]
  %s7 = inlined_call_operand.hbm [shape: bf16[16,512], index: 7, kind: output, shape index: {}]
  %s8 = sld [smem:[#allocation0]]
  $region54: #{tpu_custom_call.1} parent=0
    _
  %s10 = ssub.s32 1, %s8
  %s11 = scalar_select 0, %s10, %s8
  $region1: #{tpu_custom_call.1} parent=0
    #allocation2 [shape = 'u8[4096]{0}', space=vmem, size = 0x1000, scoped, tag = 'input window, operand 0, single buffered']
    #allocation3 [shape = 's32[1]{0}', space=sflag, size = 0x4, scoped, tag = 'scoped memory for tpu_custom_call.1']
    #allocation4 [shape = 's32[1]{0}', space=sflag, size = 0x4, scoped, tag = 'scoped memory for tpu_custom_call.1']
    #allocation5 [shape = 'u8[8192]{0}', space=vmem, size = 0x2000, scoped, tag = 'input window, operand 1, single buffered']
    #allocation6 [shape = 's32[1]{0}', space=sflag, size = 0x4, scoped, tag = 'scoped memory for tpu_custom_call.1']
    #allocation7 [shape = 'u8[32768]{0}', space=vmem, size = 0x8000, scoped, tag = 'input window, operand 3, single buffered']
    #allocation8 [shape = 'u8[163840]{0}', space=vmem, size = 0x28000, scoped, tag = 'input window, operand 5, single buffered']
    #allocation9 [shape = 's32[1]{0}', space=sflag, size = 0x4, scoped, tag = 'scoped memory for tpu_custom_call.1']
    #allocation10 [shape = 'u8[16384]{0}', space=vmem, size = 0x4000, scoped, tag = 'output window, operand 0, single buffered']
    %12 = vsyncpa [#allocation3], 0
    %13 = vsyncpa [#allocation6], 0
    %14 = vsyncpa [#allocation9], 0
    %15 = vsyncpa [#allocation4], 0
    // Predicated region
    $region2: #{tpu_custom_call.1} parent=1 // pred_check
      _
    $region3: #{tpu_custom_call.1} parent=1 // pred_check_branch
      %17 = sbr.rel (0) target = $region5
    $region4: #{tpu_custom_call.1} parent=1 // pred_region
      %s19 = ssub.s32 128, 128
      %20 = vsyncadd [#allocation3], %s19
      %s21 = sshll.u32 [#allocation2], 4
      %s22 = int_to_ptr.vmem [resolvable:$true] %s21
      %27 = dma.hbm_to_vmem [thread:$0]  %s0, 128, %s22, [#allocation3], 64, 64, 4
    $region5: #{tpu_custom_call.1} parent=1 // pred_fallthru
      _
    // Predicated region
    $region6: #{tpu_custom_call.1} parent=1 // pred_check
      _
    $region7: #{tpu_custom_call.1} parent=1 // pred_check_branch
      %29 = sbr.rel (0) target = $region9
    $region8: #{tpu_custom_call.1} parent=1 // pred_region
      %s31 = ssub.s32 256, 256
      %32 = vsyncadd [#allocation6], %s31
      %s33 = sshll.u32 [#allocation5], 4
      %s34 = int_to_ptr.vmem [resolvable:$true] %s33
      %39 = dma.hbm_to_vmem [thread:$0]  %s1, 256, %s34, [#allocation6], 64, 64, 4
    $region9: #{tpu_custom_call.1} parent=1 // pred_fallthru
      _
    // Predicated region
    $region10: #{tpu_custom_call.1} parent=1 // pred_check
      _
    $region11: #{tpu_custom_call.1} parent=1 // pred_check_branch
      %41 = sbr.rel (0) target = $region13
    $region12: #{tpu_custom_call.1} parent=1 // pred_region
      _
    $region13: #{tpu_custom_call.1} parent=1 // pred_fallthru
      _
    // Predicated region
    $region14: #{tpu_custom_call.1} parent=1 // pred_check
      _
    $region15: #{tpu_custom_call.1} parent=1 // pred_check_branch
      %43 = sbr.rel (0) target = $region17
    $region16: #{tpu_custom_call.1} parent=1 // pred_region
      %s45 = ssub.s32 1024, 1024
      %46 = vsyncadd [#allocation6], %s45
      %s47 = sshll.u32 [#allocation7], 4
      %s48 = int_to_ptr.vmem [resolvable:$true] %s47
      %53 = dma.hbm_to_vmem [thread:$0]  %s3, 1024, %s48, [#allocation6], 64, 64, 4
    $region17: #{tpu_custom_call.1} parent=1 // pred_fallthru
      _
    // Predicated region
    $region18: #{tpu_custom_call.1} parent=1 // pred_check
      _
    $region19: #{tpu_custom_call.1} parent=1 // pred_check_branch
      %55 = sbr.rel (0) target = $region21
    $region20: #{tpu_custom_call.1} parent=1 // pred_region
      _
    $region21: #{tpu_custom_call.1} parent=1 // pred_fallthru
      _
    // Predicated region
    $region22: #{tpu_custom_call.1} parent=1 // pred_check
      _
    $region23: #{tpu_custom_call.1} parent=1 // pred_check_branch
      %57 = sbr.rel (0) target = $region25
    $region24: #{tpu_custom_call.1} parent=1 // pred_region
      %s59 = ssub.s32 5120, 5120
      %60 = vsyncadd [#allocation9], %s59
      %s61 = sshll.u32 [#allocation8], 4
      %s62 = int_to_ptr.vmem [resolvable:$true] %s61
      %67 = dma.hbm_to_vmem [thread:$0]  %s5, 5120, %s62, [#allocation9], 320, 320, 20
    $region25: #{tpu_custom_call.1} parent=1 // pred_fallthru
      _
    // Predicated region
    $region26: #{tpu_custom_call.1} parent=1 // pred_check
      _
    $region27: #{tpu_custom_call.1} parent=1 // pred_check_branch
      %69 = sbr.rel (0) target = $region29
    $region28: #{tpu_custom_call.1} parent=1 // pred_region
      _
    $region29: #{tpu_custom_call.1} parent=1 // pred_fallthru
      _
    // Predicated region
    $region30: #{tpu_custom_call.1} parent=1 // pred_check
      _
    $region31: #{tpu_custom_call.1} parent=1 // pred_check_branch
      %71 = sbr.rel (0) target = $region33
    $region32: #{tpu_custom_call.1} parent=1 // pred_region
      %72 = dma.done [#allocation3], 128
    $region33: #{tpu_custom_call.1} parent=1 // pred_fallthru
      _
    // Predicated region
    $region34: #{tpu_custom_call.1} parent=1 // pred_check
      _
    $region35: #{tpu_custom_call.1} parent=1 // pred_check_branch
      %74 = sbr.rel (0) target = $region37
    $region36: #{tpu_custom_call.1} parent=1 // pred_region
      %75 = dma.done [#allocation6], 256
    $region37: #{tpu_custom_call.1} parent=1 // pred_fallthru
      _
    // Predicated region
    $region38: #{tpu_custom_call.1} parent=1 // pred_check
      _
    $region39: #{tpu_custom_call.1} parent=1 // pred_check_branch
      %77 = sbr.rel (0) target = $region41
    $region40: #{tpu_custom_call.1} parent=1 // pred_region
      %78 = dma.done [#allocation6], 1024
    $region41: #{tpu_custom_call.1} parent=1 // pred_fallthru
      _
    // Predicated region
    $region42: #{tpu_custom_call.1} parent=1 // pred_check
      _
    $region43: #{tpu_custom_call.1} parent=1 // pred_check_branch
      %80 = sbr.rel (0) target = $region45
    $region44: #{tpu_custom_call.1} parent=1 // pred_region
      %81 = dma.done [#allocation9], 5120
    $region45: #{tpu_custom_call.1} parent=1 // pred_fallthru
      _
    %v83 = vld [vmem:[#allocation2] sm:$0xf]
    %v84 = vld [vmem:[#allocation2 + $0x4] sm:$0xf]
    %v85 = vld [vmem:[#allocation5] sm:$0xf]
    %v86 = vld [vmem:[#allocation5 + $0x4] sm:$0xf]
    %v87 = vld [vmem:[#allocation5 + $0x8] sm:$0xf]
    %v88 = vld [vmem:[#allocation5 + $0xc] sm:$0xf]
    %v89 = vld [vmem:[%s2] sm:$0x1]
    %v91 = vlaneseq
    %v92 = vshrl.u32 %v91, 7
    %v93 = vsub.s32 0, %v92
    %v94 = vrot.slane %v89, %v93
    %v98 = vunpack.c.l.b16 %v83
    %v99 = vunpack.c.l.b16 %v84
    %v100 = vpack.c.b16 %v99, %v98
    %v105 = vunpack.c.l.b16 %v85
    %v106 = vunpack.c.l.b16 %v86
    %v107 = vunpack.c.l.b16 %v87
    %v108 = vunpack.c.l.b16 %v88
    %v109 = vpack.c.b16 %v106, %v105
    %v110 = vpack.c.b16 %v108, %v107
    %vm113 = vcmask 261120
    %v115 = vsel %vm113, %v100, 0
    %117 = vmatprep.subr.bf16.mxu0 0
    %118 = vmatpush1.bf16.msra.mxu0 0
    %119 = vmatprep.subr.bf16.mxu0 0
    %120 = vmatpush1.bf16.msra.mxu0 0
    %121 = vmatprep.subr.bf16.mxu0 0
    %122 = vmatpush1.bf16.msra.mxu0 0
    %123 = vmatprep.subr.bf16.mxu0 0
    %124 = vmatpush1.bf16.msra.mxu0 0
    %125 = vmatprep.subr.bf16.mxu0 0
    %126 = vmatpush1.bf16.msra.mxu0 0
    %127 = vmatprep.subr.bf16.mxu0 0
    %128 = vmatpush1.bf16.msra.mxu0 0
    %129 = vmatprep.subr.bf16.mxu0 0
    %130 = vmatpush1.bf16.msra.mxu0 %v110
    %131 = vmatprep.subr.bf16.mxu0 0
    %132 = vmatpush1.bf16.msra.mxu0 %v109
    %133 = vmatprep.subr.bf16.mxu0 0
    %134 = vmatpush2.bf16.msra.mxu0 0
    %135 = vmatprep.subr.bf16.mxu0 0
    %136 = vmatpush2.bf16.msra.mxu0 0
    %137 = vmatprep.subr.bf16.mxu0 0
    %138 = vmatpush2.bf16.msra.mxu0 0
    %139 = vmatprep.subr.bf16.mxu0 0
    %140 = vmatpush2.bf16.msra.mxu0 0
    %141 = vmatprep.subr.bf16.mxu0 0
    %142 = vmatpush2.bf16.msra.mxu0 0
    %143 = vmatprep.subr.bf16.mxu0 0
    %144 = vmatpush2.bf16.msra.mxu0 0
    %145 = vmatprep.subr.bf16.mxu0 0
    %146 = vmatpush2.bf16.msra.mxu0 0
    %147 = vmatprep.subr.bf16.mxu0 0
    %148 = vmatpush2.bf16.msra.mxu0 0
    %149 = vmatprep.mubr.bf16.mxu0 0
    %150 = vmatmul.mubr.bf16.gmra.mxu0 %v115
    %v151 = vpop.f32.mrf.mxu0
    %v152 = vadd.f32 %v94, %v151
    %v153 = vpop.f32.mrf.mxu0
    %v154 = vpop.f32.mrf.mxu0
    %v155 = vadd.f32 %v94, %v154
    %v156 = vpop.f32.mrf.mxu0
    %157 = vdwg.mxu0
    %v158 = vmax.f32 %v152, 0.0
    %v159 = vmax.f32 %v155, 0.0
    %v160 = vpack.c.bf16 %v159, %v158
    %v161 = vld [vmem:[#allocation7] sm:$0xf]
    %v162 = vld [vmem:[#allocation7 + $0x4] sm:$0xf]
    %v163 = vld [vmem:[#allocation7 + $0x8] sm:$0xf]
    %v164 = vld [vmem:[#allocation7 + $0xc] sm:$0xf]
    %v165 = vld [vmem:[#allocation7 + $0x10] sm:$0xf]
    %v166 = vld [vmem:[#allocation7 + $0x14] sm:$0xf]
    %v167 = vld [vmem:[#allocation7 + $0x18] sm:$0xf]
    %v168 = vld [vmem:[#allocation7 + $0x1c] sm:$0xf]
    %v169 = vld [vmem:[#allocation7 + $0x20] sm:$0xf]
    %v170 = vld [vmem:[#allocation7 + $0x24] sm:$0xf]
    %v171 = vld [vmem:[#allocation7 + $0x28] sm:$0xf]
    %v172 = vld [vmem:[#allocation7 + $0x2c] sm:$0xf]
    %v173 = vld [vmem:[#allocation7 + $0x30] sm:$0xf]
    %v174 = vld [vmem:[#allocation7 + $0x34] sm:$0xf]
    %v175 = vld [vmem:[#allocation7 + $0x38] sm:$0xf]
    %v176 = vld [vmem:[#allocation7 + $0x3c] sm:$0xf]
    %v177 = vld [vmem:[%s4] sm:$0x1]
    %v179 = vlaneseq
    %v180 = vshrl.u32 %v179, 7
    %v181 = vsub.s32 0, %v180
    %v182 = vrot.slane %v177, %v181
    %v200 = vunpack.c.l.b16 %v161
    %v201 = vunpack.c.l.b16 %v162
    %v202 = vunpack.c.l.b16 %v163
    %v203 = vunpack.c.l.b16 %v164
    %v204 = vunpack.c.l.b16 %v165
    %v205 = vunpack.c.l.b16 %v166
    %v206 = vunpack.c.l.b16 %v167
    %v207 = vunpack.c.l.b16 %v168
    %v208 = vunpack.c.l.b16 %v169
    %v209 = vunpack.c.l.b16 %v170
    %v210 = vunpack.c.l.b16 %v171
    %v211 = vunpack.c.l.b16 %v172
    %v212 = vunpack.c.l.b16 %v173
    %v213 = vunpack.c.l.b16 %v174
    %v214 = vunpack.c.l.b16 %v175
    %v215 = vunpack.c.l.b16 %v176
    %v216 = vpack.c.b16 %v201, %v200
    %v217 = vpack.c.b16 %v203, %v202
    %v218 = vpack.c.b16 %v205, %v204
    %v219 = vpack.c.b16 %v207, %v206
    %v220 = vpack.c.b16 %v209, %v208
    %v221 = vpack.c.b16 %v211, %v210
    %v222 = vpack.c.b16 %v213, %v212
    %v223 = vpack.c.b16 %v215, %v214
    %232 = vmatprep.subr.bf16.mxu0 0
    %233 = vmatpush1.bf16.msra.mxu0 %v223
    %234 = vmatprep.subr.bf16.mxu0 0
    %235 = vmatpush1.bf16.msra.mxu0 %v222
    %236 = vmatprep.subr.bf16.mxu0 0
    %237 = vmatpush1.bf16.msra.mxu0 %v221
    %238 = vmatprep.subr.bf16.mxu0 0
    %239 = vmatpush1.bf16.msra.mxu0 %v220
    %240 = vmatprep.subr.bf16.mxu0 0
    %241 = vmatpush1.bf16.msra.mxu0 %v219
    %242 = vmatprep.subr.bf16.mxu0 0
    %243 = vmatpush1.bf16.msra.mxu0 %v218
    %244 = vmatprep.subr.bf16.mxu0 0
    %245 = vmatpush1.bf16.msra.mxu0 %v217
    %246 = vmatprep.subr.bf16.mxu0 0
    %247 = vmatpush1.bf16.msra.mxu0 %v216
    %248 = vmatprep.subr.bf16.mxu0 0
    %249 = vmatpush2.bf16.msra.mxu0 0
    %250 = vmatprep.subr.bf16.mxu0 0
    %251 = vmatpush2.bf16.msra.mxu0 0
    %252 = vmatprep.subr.bf16.mxu0 0
    %253 = vmatpush2.bf16.msra.mxu0 0
    %254 = vmatprep.subr.bf16.mxu0 0
    %255 = vmatpush2.bf16.msra.mxu0 0
    %256 = vmatprep.subr.bf16.mxu0 0
    %257 = vmatpush2.bf16.msra.mxu0 0
    %258 = vmatprep.subr.bf16.mxu0 0
    %259 = vmatpush2.bf16.msra.mxu0 0
    %260 = vmatprep.subr.bf16.mxu0 0
    %261 = vmatpush2.bf16.msra.mxu0 0
    %262 = vmatprep.subr.bf16.mxu0 0
    %263 = vmatpush2.bf16.msra.mxu0 0
    %264 = vmatprep.mubr.bf16.mxu0 0
    %265 = vmatmul.mubr.bf16.gmra.mxu0 %v160
    %v266 = vpop.f32.mrf.mxu0
    %v267 = vadd.f32 %v182, %v266
    %v268 = vpop.f32.mrf.mxu0
    %v269 = vpop.f32.mrf.mxu0
    %v270 = vadd.f32 %v182, %v269
    %v271 = vpop.f32.mrf.mxu0
    %272 = vdwg.mxu0
    %v273 = vmax.f32 %v267, 0.0
    %v274 = vmax.f32 %v270, 0.0
    %v275 = vpack.c.bf16 %v274, %v273
    %v276 = vld [vmem:[#allocation8] sm:$0xff]
    %v277 = vld [vmem:[#allocation8 + $0x8] sm:$0xff]
    %v278 = vld [vmem:[#allocation8 + $0x10] sm:$0xf]
    %v279 = vld [vmem:[#allocation8 + $0x14] sm:$0xff]
    %v280 = vld [vmem:[#allocation8 + $0x1c] sm:$0xff]
    %v281 = vld [vmem:[#allocation8 + $0x24] sm:$0xf]
    %v282 = vld [vmem:[#allocation8 + $0x28] sm:$0xff]
    %v283 = vld [vmem:[#allocation8 + $0x30] sm:$0xff]
    %v284 = vld [vmem:[#allocation8 + $0x38] sm:$0xf]
    %v285 = vld [vmem:[#allocation8 + $0x3c] sm:$0xff]
    %v286 = vld [vmem:[#allocation8 + $0x44] sm:$0xff]
    %v287 = vld [vmem:[#allocation8 + $0x4c] sm:$0xf]
    %v288 = vld [vmem:[#allocation8 + $0x50] sm:$0xff]
    %v289 = vld [vmem:[#allocation8 + $0x58] sm:$0xff]
    %v290 = vld [vmem:[#allocation8 + $0x60] sm:$0xf]
    %v291 = vld [vmem:[#allocation8 + $0x64] sm:$0xff]
    %v292 = vld [vmem:[#allocation8 + $0x6c] sm:$0xff]
    %v293 = vld [vmem:[#allocation8 + $0x74] sm:$0xf]
    %v294 = vld [vmem:[#allocation8 + $0x78] sm:$0xff]
    %v295 = vld [vmem:[#allocation8 + $0x80] sm:$0xff]
    %v296 = vld [vmem:[#allocation8 + $0x88] sm:$0xf]
    %v297 = vld [vmem:[#allocation8 + $0x8c] sm:$0xff]
    %v298 = vld [vmem:[#allocation8 + $0x94] sm:$0xff]
    %v299 = vld [vmem:[#allocation8 + $0x9c] sm:$0xf]
    %v300 = vld [vmem:[#allocation8 + $0xa0] sm:$0xff]
    %v301 = vld [vmem:[#allocation8 + $0xa8] sm:$0xff]
    %v302 = vld [vmem:[#allocation8 + $0xb0] sm:$0xf]
    %v303 = vld [vmem:[#allocation8 + $0xb4] sm:$0xff]
    %v304 = vld [vmem:[#allocation8 + $0xbc] sm:$0xff]
    %v305 = vld [vmem:[#allocation8 + $0xc4] sm:$0xf]
    %v306 = vld [vmem:[#allocation8 + $0xc8] sm:$0xff]
    %v307 = vld [vmem:[#allocation8 + $0xd0] sm:$0xff]
    %v308 = vld [vmem:[#allocation8 + $0xd8] sm:$0xf]
    %v309 = vld [vmem:[#allocation8 + $0xdc] sm:$0xff]
    %v310 = vld [vmem:[#allocation8 + $0xe4] sm:$0xff]
    %v311 = vld [vmem:[#allocation8 + $0xec] sm:$0xf]
    %v312 = vld [vmem:[#allocation8 + $0xf0] sm:$0xff]
    %v313 = vld [vmem:[#allocation8 + $0xf8] sm:$0xff]
    %v314 = vld [vmem:[#allocation8 + $0x100] sm:$0xf]
    %v315 = vld [vmem:[#allocation8 + $0x104] sm:$0xff]
    %v316 = vld [vmem:[#allocation8 + $0x10c] sm:$0xff]
    %v317 = vld [vmem:[#allocation8 + $0x114] sm:$0xf]
    %v318 = vld [vmem:[#allocation8 + $0x118] sm:$0xff]
    %v319 = vld [vmem:[#allocation8 + $0x120] sm:$0xff]
    %v320 = vld [vmem:[#allocation8 + $0x128] sm:$0xf]
    %v321 = vld [vmem:[#allocation8 + $0x12c] sm:$0xff]
    %v322 = vld [vmem:[#allocation8 + $0x134] sm:$0xff]
    %v323 = vld [vmem:[#allocation8 + $0x13c] sm:$0xf]
    %v324 = vld [vmem:[%s6] sm:$0x1f]
    %v326 = vlaneseq
    %v327 = vshrl.u32 %v326, 7
    %v328 = vsub.s32 0, %v327
    %v329 = vrot.slane %v324, %v328
    %v330 = vlaneseq
    %v331 = vshrl.u32 %v330, 7
    %v332 = vsub.s32 1, %v331
    %v333 = vrot.slane %v324, %v332
    %v334 = vlaneseq
    %v335 = vshrl.u32 %v334, 7
    %v336 = vsub.s32 2, %v335
    %v337 = vrot.slane %v324, %v336
    %v338 = vlaneseq
    %v339 = vshrl.u32 %v338, 7
    %v340 = vsub.s32 3, %v339
    %v341 = vrot.slane %v324, %v340
    %v342 = vlaneseq
    %v343 = vshrl.u32 %v342, 7
    %v344 = vsub.s32 4, %v343
    %v345 = vrot.slane %v324, %v344
    %v399 = vunpack.c.l.b16 %v276
    %v400 = vunpack.c.h.b16 %v276
    %v401 = vunpack.c.l.b16 %v277
    %v402 = vunpack.c.h.b16 %v277
    %v403 = vunpack.c.l.b16 %v278
    %v404 = vunpack.c.l.b16 %v279
    %v405 = vunpack.c.h.b16 %v279
    %v406 = vunpack.c.l.b16 %v280
    %v407 = vunpack.c.h.b16 %v280
    %v408 = vunpack.c.l.b16 %v281
    %v409 = vunpack.c.l.b16 %v282
    %v410 = vunpack.c.h.b16 %v282
    %v411 = vunpack.c.l.b16 %v283
    %v412 = vunpack.c.h.b16 %v283
    %v413 = vunpack.c.l.b16 %v284
    %v414 = vunpack.c.l.b16 %v285
    %v415 = vunpack.c.h.b16 %v285
    %v416 = vunpack.c.l.b16 %v286
    %v417 = vunpack.c.h.b16 %v286
    %v418 = vunpack.c.l.b16 %v287
    %v419 = vunpack.c.l.b16 %v288
    %v420 = vunpack.c.h.b16 %v288
    %v421 = vunpack.c.l.b16 %v289
    %v422 = vunpack.c.h.b16 %v289
    %v423 = vunpack.c.l.b16 %v290
    %v424 = vunpack.c.l.b16 %v291
    %v425 = vunpack.c.h.b16 %v291
    %v426 = vunpack.c.l.b16 %v292
    %v427 = vunpack.c.h.b16 %v292
    %v428 = vunpack.c.l.b16 %v293
    %v429 = vunpack.c.l.b16 %v294
    %v430 = vunpack.c.h.b16 %v294
    %v431 = vunpack.c.l.b16 %v295
    %v432 = vunpack.c.h.b16 %v295
    %v433 = vunpack.c.l.b16 %v296
    %v434 = vunpack.c.l.b16 %v297
    %v435 = vunpack.c.h.b16 %v297
    %v436 = vunpack.c.l.b16 %v298
    %v437 = vunpack.c.h.b16 %v298
    %v438 = vunpack.c.l.b16 %v299
    %v439 = vunpack.c.l.b16 %v300
    %v440 = vunpack.c.h.b16 %v300
    %v441 = vunpack.c.l.b16 %v301
    %v442 = vunpack.c.h.b16 %v301
    %v443 = vunpack.c.l.b16 %v302
    %v444 = vunpack.c.l.b16 %v303
    %v445 = vunpack.c.h.b16 %v303
    %v446 = vunpack.c.l.b16 %v304
    %v447 = vunpack.c.h.b16 %v304
    %v448 = vunpack.c.l.b16 %v305
    %v449 = vunpack.c.l.b16 %v306
    %v450 = vunpack.c.h.b16 %v306
    %v451 = vunpack.c.l.b16 %v307
    %v452 = vunpack.c.h.b16 %v307
    %v453 = vunpack.c.l.b16 %v308
    %v454 = vunpack.c.l.b16 %v309
    %v455 = vunpack.c.h.b16 %v309
    %v456 = vunpack.c.l.b16 %v310
    %v457 = vunpack.c.h.b16 %v310
    %v458 = vunpack.c.l.b16 %v311
    %v459 = vunpack.c.l.b16 %v312
    %v460 = vunpack.c.h.b16 %v312
    %v461 = vunpack.c.l.b16 %v313
    %v462 = vunpack.c.h.b16 %v313
    %v463 = vunpack.c.l.b16 %v314
    %v464 = vunpack.c.l.b16 %v315
    %v465 = vunpack.c.h.b16 %v315
    %v466 = vunpack.c.l.b16 %v316
    %v467 = vunpack.c.h.b16 %v316
    %v468 = vunpack.c.l.b16 %v317
    %v469 = vunpack.c.l.b16 %v318
    %v470 = vunpack.c.h.b16 %v318
    %v471 = vunpack.c.l.b16 %v319
    %v472 = vunpack.c.h.b16 %v319
    %v473 = vunpack.c.l.b16 %v320
    %v474 = vunpack.c.l.b16 %v321
    %v475 = vunpack.c.h.b16 %v321
    %v476 = vunpack.c.l.b16 %v322
    %v477 = vunpack.c.h.b16 %v322
    %v478 = vunpack.c.l.b16 %v323
    %v479 = vpack.c.b16 %v404, %v399
    %v480 = vpack.c.b16 %v405, %v400
    %v481 = vpack.c.b16 %v406, %v401
    %v482 = vpack.c.b16 %v407, %v402
    %v483 = vpack.c.b16 %v408, %v403
    %v484 = vpack.c.b16 %v414, %v409
    %v485 = vpack.c.b16 %v415, %v410
    %v486 = vpack.c.b16 %v416, %v411
    %v487 = vpack.c.b16 %v417, %v412
    %v488 = vpack.c.b16 %v418, %v413
    %v489 = vpack.c.b16 %v424, %v419
    %v490 = vpack.c.b16 %v425, %v420
    %v491 = vpack.c.b16 %v426, %v421
    %v492 = vpack.c.b16 %v427, %v422
    %v493 = vpack.c.b16 %v428, %v423
    %v494 = vpack.c.b16 %v434, %v429
    %v495 = vpack.c.b16 %v435, %v430
    %v496 = vpack.c.b16 %v436, %v431
    %v497 = vpack.c.b16 %v437, %v432
    %v498 = vpack.c.b16 %v438, %v433
    %v499 = vpack.c.b16 %v444, %v439
    %v500 = vpack.c.b16 %v445, %v440
    %v501 = vpack.c.b16 %v446, %v441
    %v502 = vpack.c.b16 %v447, %v442
    %v503 = vpack.c.b16 %v448, %v443
    %v504 = vpack.c.b16 %v454, %v449
    %v505 = vpack.c.b16 %v455, %v450
    %v506 = vpack.c.b16 %v456, %v451
    %v507 = vpack.c.b16 %v457, %v452
    %v508 = vpack.c.b16 %v458, %v453
    %v509 = vpack.c.b16 %v464, %v459
    %v510 = vpack.c.b16 %v465, %v460
    %v511 = vpack.c.b16 %v466, %v461
    %v512 = vpack.c.b16 %v467, %v462
    %v513 = vpack.c.b16 %v468, %v463
    %v514 = vpack.c.b16 %v474, %v469
    %v515 = vpack.c.b16 %v475, %v470
    %v516 = vpack.c.b16 %v476, %v471
    %v517 = vpack.c.b16 %v477, %v472
    %v518 = vpack.c.b16 %v478, %v473
    %559 = vmatprep.subr.bf16.mxu0 %v515
    %560 = vmatpush1.bf16.msra.mxu0 %v514
    %561 = vmatprep.subr.bf16.mxu0 %v510
    %562 = vmatpush1.bf16.msra.mxu0 %v509
    %563 = vmatprep.subr.bf16.mxu0 %v505
    %564 = vmatpush1.bf16.msra.mxu0 %v504
    %565 = vmatprep.subr.bf16.mxu0 %v500
    %566 = vmatpush1.bf16.msra.mxu0 %v499
    %567 = vmatprep.subr.bf16.mxu0 %v495
    %568 = vmatpush1.bf16.msra.mxu0 %v494
    %569 = vmatprep.subr.bf16.mxu0 %v490
    %570 = vmatpush1.bf16.msra.mxu0 %v489
    %571 = vmatprep.subr.bf16.mxu0 %v485
    %572 = vmatpush1.bf16.msra.mxu0 %v484
    %573 = vmatprep.subr.bf16.mxu0 %v480
    %574 = vmatpush1.bf16.msra.mxu0 %v479
    %575 = vmatprep.subr.bf16.mxu0 0
    %576 = vmatpush2.bf16.msra.mxu0 0
    %577 = vmatprep.subr.bf16.mxu0 0
    %578 = vmatpush2.bf16.msra.mxu0 0
    %579 = vmatprep.subr.bf16.mxu0 0
    %580 = vmatpush2.bf16.msra.mxu0 0
    %581 = vmatprep.subr.bf16.mxu0 0
    %582 = vmatpush2.bf16.msra.mxu0 0
    %583 = vmatprep.subr.bf16.mxu0 0
    %584 = vmatpush2.bf16.msra.mxu0 0
    %585 = vmatprep.subr.bf16.mxu0 0
    %586 = vmatpush2.bf16.msra.mxu0 0
    %587 = vmatprep.subr.bf16.mxu0 0
    %588 = vmatpush2.bf16.msra.mxu0 0
    %589 = vmatprep.subr.bf16.mxu0 0
    %590 = vmatpush2.bf16.msra.mxu0 0
    %591 = vmatprep.mubr.bf16.mxu0 0
    %592 = vmatmul.mubr.bf16.gmra.mxu0 %v275
    %v593 = vpop.f32.mrf.mxu0
    %v594 = vadd.f32 %v329, %v593
    %v595 = vpop.f32.mrf.mxu0
    %v596 = vadd.f32 %v333, %v595
    %v597 = vpop.f32.mrf.mxu0
    %v598 = vadd.f32 %v329, %v597
    %v599 = vpop.f32.mrf.mxu0
    %v600 = vadd.f32 %v333, %v599
    %601 = vdwg.mxu0
    %602 = vmatprep.subr.bf16.mxu0 %v517
    %603 = vmatpush1.bf16.msra.mxu0 %v516
    %604 = vmatprep.subr.bf16.mxu0 %v512
    %605 = vmatpush1.bf16.msra.mxu0 %v511
    %606 = vmatprep.subr.bf16.mxu0 %v507
    %607 = vmatpush1.bf16.msra.mxu0 %v506
    %608 = vmatprep.subr.bf16.mxu0 %v502
    %609 = vmatpush1.bf16.msra.mxu0 %v501
    %610 = vmatprep.subr.bf16.mxu0 %v497
    %611 = vmatpush1.bf16.msra.mxu0 %v496
    %612 = vmatprep.subr.bf16.mxu0 %v492
    %613 = vmatpush1.bf16.msra.mxu0 %v491
    %614 = vmatprep.subr.bf16.mxu0 %v487
    %615 = vmatpush1.bf16.msra.mxu0 %v486
    %616 = vmatprep.subr.bf16.mxu0 %v482
    %617 = vmatpush1.bf16.msra.mxu0 %v481
    %618 = vmatprep.subr.bf16.mxu0 0
    %619 = vmatpush2.bf16.msra.mxu0 0
    %620 = vmatprep.subr.bf16.mxu0 0
    %621 = vmatpush2.bf16.msra.mxu0 0
    %622 = vmatprep.subr.bf16.mxu0 0
    %623 = vmatpush2.bf16.msra.mxu0 0
    %624 = vmatprep.subr.bf16.mxu0 0
    %625 = vmatpush2.bf16.msra.mxu0 0
    %626 = vmatprep.subr.bf16.mxu0 0
    %627 = vmatpush2.bf16.msra.mxu0 0
    %628 = vmatprep.subr.bf16.mxu0 0
    %629 = vmatpush2.bf16.msra.mxu0 0
    %630 = vmatprep.subr.bf16.mxu0 0
    %631 = vmatpush2.bf16.msra.mxu0 0
    %632 = vmatprep.subr.bf16.mxu0 0
    %633 = vmatpush2.bf16.msra.mxu0 0
    %634 = vmatprep.mubr.bf16.mxu0 0
    %635 = vmatmul.mubr.bf16.gmra.mxu0 %v275
    %v636 = vpop.f32.mrf.mxu0
    %v637 = vadd.f32 %v337, %v636
    %v638 = vpop.f32.mrf.mxu0
    %v639 = vadd.f32 %v341, %v638
    %v640 = vpop.f32.mrf.mxu0
    %v641 = vadd.f32 %v337, %v640
    %v642 = vpop.f32.mrf.mxu0
    %v643 = vadd.f32 %v341, %v642
    %644 = vdwg.mxu0
    %645 = vmatprep.subr.bf16.mxu0 0
    %646 = vmatpush1.bf16.msra.mxu0 %v518
    %647 = vmatprep.subr.bf16.mxu0 0
    %648 = vmatpush1.bf16.msra.mxu0 %v513
    %649 = vmatprep.subr.bf16.mxu0 0
    %650 = vmatpush1.bf16.msra.mxu0 %v508
    %651 = vmatprep.subr.bf16.mxu0 0
    %652 = vmatpush1.bf16.msra.mxu0 %v503
    %653 = vmatprep.subr.bf16.mxu0 0
    %654 = vmatpush1.bf16.msra.mxu0 %v498
    %655 = vmatprep.subr.bf16.mxu0 0
    %656 = vmatpush1.bf16.msra.mxu0 %v493
    %657 = vmatprep.subr.bf16.mxu0 0
    %658 = vmatpush1.bf16.msra.mxu0 %v488
    %659 = vmatprep.subr.bf16.mxu0 0
    %660 = vmatpush1.bf16.msra.mxu0 %v483
    %661 = vmatprep.subr.bf16.mxu0 0
    %662 = vmatpush2.bf16.msra.mxu0 0
    %663 = vmatprep.subr.bf16.mxu0 0
    %664 = vmatpush2.bf16.msra.mxu0 0
    %665 = vmatprep.subr.bf16.mxu0 0
    %666 = vmatpush2.bf16.msra.mxu0 0
    %667 = vmatprep.subr.bf16.mxu0 0
    %668 = vmatpush2.bf16.msra.mxu0 0
    %669 = vmatprep.subr.bf16.mxu0 0
    %670 = vmatpush2.bf16.msra.mxu0 0
    %671 = vmatprep.subr.bf16.mxu0 0
    %672 = vmatpush2.bf16.msra.mxu0 0
    %673 = vmatprep.subr.bf16.mxu0 0
    %674 = vmatpush2.bf16.msra.mxu0 0
    %675 = vmatprep.subr.bf16.mxu0 0
    %676 = vmatpush2.bf16.msra.mxu0 0
    %677 = vmatprep.mubr.bf16.mxu0 0
    %678 = vmatmul.mubr.bf16.gmra.mxu0 %v275
    %v679 = vpop.f32.mrf.mxu0
    %v680 = vadd.f32 %v345, %v679
    %v681 = vpop.f32.mrf.mxu0
    %v682 = vpop.f32.mrf.mxu0
    %v683 = vadd.f32 %v345, %v682
    %v684 = vpop.f32.mrf.mxu0
    %685 = vdwg.mxu0
    %v686 = vadd.f32 %v594, %v596
    %v687 = vadd.f32 %v598, %v600
    %v688 = vadd.f32 %v686, %v637
    %v689 = vadd.f32 %v687, %v641
    %v690 = vadd.f32 %v688, %v639
    %v691 = vadd.f32 %v689, %v643
    %v692 = vmul.f32 %v690, 0.25
    %v693 = vmul.f32 %v691, 0.25
    %v694 = vsub.f32 %v680, %v692
    %v695 = vsub.f32 %v683, %v693
    %v696 = vlaneseq
    %v697 = vand.u32 %v696, 127
    %vm698 = vcmp.lt.s32.totalorder %v697, 51
    %v699 = vadd.f32 %v594, %v694
    %v700 = vadd.f32 %v598, %v695
    %v701 = vsel %vm698, %v699, -1e+30
    %v702 = vsel %vm698, %v700, -1e+30
    %703 = vmax.xlane.f32.xlu0 %v701
    %v704 = vpop.xlane.xlu0 %703
    %705 = vmax.xlane.f32.xlu0 %v702
    %v706 = vpop.xlane.xlu0 %705
    %v707 = vsub.f32 %v701, %v704
    %v708 = vsub.f32 %v702, %v706
    %v709 = vmul.f32 %v707, 1.442695
    %v710 = vpow.pop %v709
    %v711 = vmul.f32 %v708, 1.442695
    %v712 = vpow.pop %v711
    %713 = vadd.xlane.f32.xlu0 %v710
    %v714 = vpop.xlane.xlu0 %713
    %715 = vadd.xlane.f32.xlu0 %v712
    %v716 = vpop.xlane.xlu0 %715
    %v717 = vrcp.pop %v714
    %v718 = vmul.f32 %v710, %v717
    %v719 = vrcp.pop %v716
    %v720 = vmul.f32 %v712, %v719
    %v721 = vadd.f32 %v596, %v694
    %v722 = vadd.f32 %v600, %v695
    %v723 = vsel %vm698, %v721, -1e+30
    %v724 = vsel %vm698, %v722, -1e+30
    %725 = vmax.xlane.f32.xlu0 %v723
    %v726 = vpop.xlane.xlu0 %725
    %727 = vmax.xlane.f32.xlu0 %v724
    %v728 = vpop.xlane.xlu0 %727
    %v729 = vsub.f32 %v723, %v726
    %v730 = vsub.f32 %v724, %v728
    %v731 = vmul.f32 %v729, 1.442695
    %v732 = vpow.pop %v731
    %v733 = vmul.f32 %v730, 1.442695
    %v734 = vpow.pop %v733
    %735 = vadd.xlane.f32.xlu0 %v732
    %v736 = vpop.xlane.xlu0 %735
    %737 = vadd.xlane.f32.xlu0 %v734
    %v738 = vpop.xlane.xlu0 %737
    %v739 = vrcp.pop %v736
    %v740 = vmul.f32 %v732, %v739
    %v741 = vrcp.pop %v738
    %v742 = vmul.f32 %v734, %v741
    %v743 = vadd.f32 %v637, %v694
    %v744 = vadd.f32 %v641, %v695
    %v745 = vsel %vm698, %v743, -1e+30
    %v746 = vsel %vm698, %v744, -1e+30
    %747 = vmax.xlane.f32.xlu0 %v745
    %v748 = vpop.xlane.xlu0 %747
    %749 = vmax.xlane.f32.xlu0 %v746
    %v750 = vpop.xlane.xlu0 %749
    %v751 = vsub.f32 %v745, %v748
    %v752 = vsub.f32 %v746, %v750
    %v753 = vmul.f32 %v751, 1.442695
    %v754 = vpow.pop %v753
    %v755 = vmul.f32 %v752, 1.442695
    %v756 = vpow.pop %v755
    %757 = vadd.xlane.f32.xlu0 %v754
    %v758 = vpop.xlane.xlu0 %757
    %759 = vadd.xlane.f32.xlu0 %v756
    %v760 = vpop.xlane.xlu0 %759
    %v761 = vrcp.pop %v758
    %v762 = vmul.f32 %v754, %v761
    %v763 = vrcp.pop %v760
    %v764 = vmul.f32 %v756, %v763
    %v765 = vadd.f32 %v639, %v694
    %v766 = vadd.f32 %v643, %v695
    %v767 = vsel %vm698, %v765, -1e+30
    %v768 = vsel %vm698, %v766, -1e+30
    %769 = vmax.xlane.f32.xlu0 %v767
    %v770 = vpop.xlane.xlu0 %769
    %771 = vmax.xlane.f32.xlu0 %v768
    %v772 = vpop.xlane.xlu0 %771
    %v773 = vsub.f32 %v767, %v770
    %v774 = vsub.f32 %v768, %v772
    %v775 = vmul.f32 %v773, 1.442695
    %v776 = vpow.pop %v775
    %v777 = vmul.f32 %v774, 1.442695
    %v778 = vpow.pop %v777
    %779 = vadd.xlane.f32.xlu0 %v776
    %v780 = vpop.xlane.xlu0 %779
    %781 = vadd.xlane.f32.xlu0 %v778
    %v782 = vpop.xlane.xlu0 %781
    %v783 = vrcp.pop %v780
    %v784 = vmul.f32 %v776, %v783
    %v785 = vrcp.pop %v782
    %v786 = vmul.f32 %v778, %v785
    %v787 = vpack.c.bf16 %v720, %v718
    %v788 = vpack.c.bf16 %v742, %v740
    %v789 = vpack.c.bf16 %v764, %v762
    %v790 = vpack.c.bf16 %v786, %v784
    %v795 = vunpack.c.l.b16 %v787
    %v796 = vunpack.c.l.b16 %v788
    %v797 = vunpack.c.l.b16 %v789
    %v798 = vunpack.c.l.b16 %v790
    %v799 = vunpack.c.h.b16 %v787
    %v800 = vunpack.c.h.b16 %v788
    %v801 = vunpack.c.h.b16 %v789
    %v802 = vunpack.c.h.b16 %v790
    %v803 = vpack.c.b16 %v796, %v795
    %v804 = vpack.c.b16 %v798, %v797
    %v805 = vpack.c.b16 %v800, %v799
    %v806 = vpack.c.b16 %v802, %v801
    %811 = vst [vmem:[#allocation10] sm:$0xff] %v803
    %812 = vst [vmem:[#allocation10 + $0x8] sm:$0xff] %v804
    %813 = vst [vmem:[#allocation10 + $0x10] sm:$0xff] %v805
    %814 = vst [vmem:[#allocation10 + $0x18] sm:$0xff] %v806
    // Predicated region
    $region46: #{tpu_custom_call.1} parent=1 // pred_check
      _
    $region47: #{tpu_custom_call.1} parent=1 // pred_check_branch
      %816 = sbr.rel (0) target = $region49
    $region48: #{tpu_custom_call.1} parent=1 // pred_region
      %s818 = ssub.s32 512, 512
      %819 = vsyncadd [#allocation4], %s818
      %s820 = sshll.u32 [#allocation10], 4
      %s821 = int_to_ptr.vmem [resolvable:$true] %s820
      %826 = dma.vmem_to_hbm [thread:$0]  %s821, 512, %s7, [#allocation4], 256, 256, 16
    $region49: #{tpu_custom_call.1} parent=1 // pred_fallthru
      _
    // Predicated region
    $region50: #{tpu_custom_call.1} parent=1 // pred_check
      _
    $region51: #{tpu_custom_call.1} parent=1 // pred_check_branch
      %828 = sbr.rel (0) target = $region53
    $region52: #{tpu_custom_call.1} parent=1 // pred_region
      %829 = dma.done [#allocation4], 512
    $region53: #{tpu_custom_call.1} parent=1 // pred_fallthru
      _
    %830 = vsyncpa [#allocation3], 1
    %831 = vsyncpa [#allocation6], 1
    %832 = vsyncpa [#allocation9], 1
    %833 = vsyncpa [#allocation4], 1

</llo_original>
